<compile_context>
chip_gen: v6e
topology: v6e:2x2x1
jax: 0.10.0
libtpu: 0.0.40
codegen_flags: <defaults>
</compile_context>

<pallas_src>
import functools

import jax
import jax.numpy as jnp
from jax.experimental import pallas as pl
from jax.experimental.pallas import tpu as pltpu

_BIG = 1e30      # finite "+inf" init for the min accumulators
_PAD_X = 1.0e8   # sentinel coordinate for padded x rows
_PAD_Y = -1.0e8  # sentinel coordinate for padded y cols


def _chamfer_kernel(x_ref, yt_ref, o_ref,
                    rowmin_ref, colmin_ref, d1_ref, d2_ref,
                    *, D, P1, P2, TP1, TP2, use_mxu):
    i = pl.program_id(1)          # P1 tile index
    j = pl.program_id(2)          # P2 tile index (innermost)
    n_i = pl.num_programs(1)
    n_j = pl.num_programs(2)

    need_row_mask = (P1 % TP1) != 0   # static Python bools
    need_col_mask = (P2 % TP2) != 0

    x = x_ref[...]     # (TP1, D_eff) f32
    yt = yt_ref[...]   # (D_eff, TP2) f32

    if use_mxu:
        # Operands are pre-augmented in the wrapper: x = [-2x, |x|^2, 1],
        # yt = [y; 1; |y|^2], so one MXU matmul yields squared distances directly.
        sq = jnp.dot(x, yt, preferred_element_type=jnp.float32)
    else:
        # Small D: unrolled (x_d - y_d)^2 on the VPU; no Gram cancellation.
        diff = x[:, 0:1] - yt[0:1, :]
        sq = diff * diff
        for d in range(1, D):
            diff = x[:, d:d + 1] - yt[d:d + 1, :]
            sq = sq + diff * diff

    # ---- d1 path: running min over P2 (lanes), carried over j in VMEM scratch ----
    rmin = jnp.min(sq, axis=1, keepdims=True)                        # (TP1, 1)
    prev_r = jnp.where(j == 0, jnp.full((TP1, 1), _BIG, jnp.float32),
                       rowmin_ref[...])
    new_r = jnp.minimum(prev_r, rmin)
    rowmin_ref[...] = new_r

    # ---- d2 path: running min over P1 (sublanes), carried over i per j tile ----
    cmin = jnp.min(sq, axis=0, keepdims=True)                        # (1, TP2)
    prev_c = jnp.where(i == 0, jnp.full((1, TP2), _BIG, jnp.float32),
                       colmin_ref[pl.ds(j, 1), :])
    new_c = jnp.minimum(prev_c, cmin)
    colmin_ref[pl.ds(j, 1), :] = new_c

    # Finalize d1 partial for x tile i once its sweep over all P2 tiles ends.
    @pl.when(j == n_j - 1)
    def _():
        vals = jnp.sqrt(jnp.maximum(new_r, 0.0))          # sqrt after min (+clamp)
        if need_row_mask:
            row_ids = i * TP1 + jax.lax.broadcasted_iota(jnp.int32, (TP1, 1), 0)
            vals = jnp.where(row_ids < P1, vals, 0.0)
        part = jnp.sum(vals, keepdims=True)               # (1, 1)
        prev = jnp.where(i == 0, jnp.zeros((1, 1), jnp.float32), d1_ref[...])
        d1_ref[...] = prev + part

    # Finalize d2 partial for y tile j once all P1 tiles have been visited.
    @pl.when(i == n_i - 1)
    def _():
        vals = jnp.sqrt(jnp.maximum(new_c, 0.0))
        if need_col_mask:
            col_ids = j * TP2 + jax.lax.broadcasted_iota(jnp.int32, (1, TP2), 1)
            vals = jnp.where(col_ids < P2, vals, 0.0)
        part = jnp.sum(vals, keepdims=True)               # (1, 1)
        prev = jnp.where(j == 0, jnp.zeros((1, 1), jnp.float32), d2_ref[...])
        d2_ref[...] = prev + part

    # Write the per-batch scalar once, at the batch's final tile.
    @pl.when((i == n_i - 1) & (j == n_j - 1))
    def _():
        total = (d1_ref[...] * jnp.float32(1.0 / P1)
                 + d2_ref[...] * jnp.float32(1.0 / P2))
        o_ref[...] = total * jnp.float32(0.5)


def _round_up(v, m):
    return (v + m - 1) // m * m


def _pick_tile(p, max_tile, align):
    """Balanced tile size <= max_tile, rounded up to `align`."""
    max_tile = max(align, (max_tile // align) * align)
    n_tiles = -(-p // max_tile)
    t = -(-p // n_tiles)
    return _round_up(t, align)


def _vmem_capacity_bytes():
    try:
        info = pltpu.get_tpu_info()
        cap = getattr(info, "vmem_capacity_bytes", None)
        if cap:
            return int(cap)
    except Exception:
        pass
    return 64 * 1024 * 1024   # conservative fallback (v7x per-TensorCore VMEM)


def chamfer_distance(x, y, reduction='none', *, tp1=None, tp2=None, mxu_min_d=5):
    """Pallas-TPU equivalent of ChamferDistancePytorch(reduction).forward(x, y).

    x: (N, P1, D), y: (N, P2, D).  Tiles default to 512 x 2048 (or 512 x 4096 when
    >=100 MiB VMEM is detected, i.e. v5e/v6e); vmem_limit_bytes is set to ~3/4 of
    the detected per-core VMEM so v7x (64 MiB) stays within budget.
    """
    if x.shape[0] == 0:
        # Matches the PyTorch early-return `x.sum()`.
        return jnp.sum(x)

    x = x.astype(jnp.float32)
    y = y.astype(jnp.float32)
    N, P1, D = x.shape
    N2, P2, D2 = y.shape
    assert N == N2 and D == D2, (x.shape, y.shape)

    # Chamfer cost is symmetric in (x, y): keep the smaller cloud on the lane axis
    # so the persistent colmin scratch (~lane-cloud size) stays small.
    if P2 > P1:
        x, y = y, x
        P1, P2 = P2, P1

    cap = _vmem_capacity_bytes()
    vmem_limit = int(cap * 3) // 4            # ~48 MiB on v7x, ~96 MiB on v5e/v6e
    if tp1 is None:
        tp1 = 512
    if tp2 is None:
        tp2 = 4096 if cap >= (100 << 20) else 2048

    TP1 = _pick_tile(P1, tp1, 8)      # sublane-aligned
    TP2 = _pick_tile(P2, tp2, 128)    # lane-dense
    P1_pad = _round_up(P1, TP1)
    P2_pad = _round_up(P2, TP2)
    n_i = P1_pad // TP1
    n_j = P2_pad // TP2

    # Sentinel-coordinate padding: padded<->real pairs get huge squared distances
    # (~1e16 per dim, well below f32 max and far above any real distance), so no
    # full-tile masking is needed inside the kernel.
    if P1_pad != P1:
        x = jnp.pad(x, ((0, 0), (0, P1_pad - P1), (0, 0)), constant_values=_PAD_X)
    if P2_pad != P2:
        y = jnp.pad(y, ((0, 0), (0, P2_pad - P2), (0, 0)), constant_values=_PAD_Y)

    use_mxu = D >= mxu_min_d
    if use_mxu:
        # Fused Gram operands: sq = [-2x, |x|^2, 1] @ [y; 1; |y|^2]
        # (built once here, not per (i, j) tile inside the kernel).
        x_in = jnp.concatenate(
            [-2.0 * x,
             jnp.sum(x * x, axis=-1, keepdims=True),
             jnp.ones((N, P1_pad, 1), jnp.float32)], axis=-1)          # (N,P1,D+2)
        y_aug = jnp.concatenate(
            [y,
             jnp.ones((N, P2_pad, 1), jnp.float32),
             jnp.sum(y * y, axis=-1, keepdims=True)], axis=-1)         # (N,P2,D+2)
        y_in = jnp.transpose(y_aug, (0, 2, 1))                          # (N,D+2,P2)
        D_eff = D + 2
    else:
        x_in = x
        y_in = jnp.transpose(y, (0, 2, 1))                              # (N,D,P2)
        D_eff = D

    kernel = functools.partial(
        _chamfer_kernel,
        D=D, P1=P1, P2=P2, TP1=TP1, TP2=TP2, use_mxu=use_mxu)

    out = pl.pallas_call(
        kernel,
        out_shape=jax.ShapeDtypeStruct((N, 1, 1), jnp.float32),
        grid_spec=pltpu.PrefetchScalarGridSpec(
            num_scalar_prefetch=0,
            grid=(N, n_i, n_j),
            in_specs=[
                pl.BlockSpec((None, TP1, D_eff), lambda b, i, j: (b, i, 0)),
                pl.BlockSpec((None, D_eff, TP2), lambda b, i, j: (b, 0, j)),
            ],
            out_specs=pl.BlockSpec((None, 1, 1), lambda b, i, j: (b, 0, 0)),
            scratch_shapes=[
                pltpu.VMEM((TP1, 1), jnp.float32),    # row-min, carried over j
                pltpu.VMEM((n_j, TP2), jnp.float32),  # col-min, dense, carried over i
                pltpu.VMEM((1, 1), jnp.float32),      # d1 running sum
                pltpu.VMEM((1, 1), jnp.float32),      # d2 running sum
            ],
        ),
        compiler_params=pltpu.CompilerParams(
            dimension_semantics=("parallel", "arbitrary", "arbitrary"),
            vmem_limit_bytes=int(vmem_limit)),
    )(x_in, y_in)

    cost = out[:, 0, 0]                                  # (N,)
    if reduction == 'mean':
        cost = jnp.mean(cost)
    elif reduction == 'sum':
        cost = jnp.sum(cost)
    return cost


def _chamfer_reference(x, y):
    """Pure-JAX reference mirroring the PyTorch math (difference-based)."""
    x = x.astype(jnp.float32)
    y = y.astype(jnp.float32)
    diff = x[:, :, None, :] - y[:, None, :, :]
    C = jnp.sqrt(jnp.sum(diff * diff, axis=-1))
    d1 = jnp.mean(jnp.min(C, axis=-1), axis=-1)
    d2 = jnp.mean(jnp.min(C, axis=-2), axis=-1)
    return 0.5 * (d1 + d2)


if __name__ == "__main__":
    key = jax.random.PRNGKey(0)
    ks = jax.random.split(key, 6)

    # Test 1: D=3 VPU path, multi-tile on both axes, sentinel padding + finalize
    # masks on both axes, dense colmin scratch with dynamic j indexing.
    x1 = jax.random.normal(ks[0], (2, 300, 3), dtype=jnp.float32)
    y1 = jax.random.normal(ks[1], (2, 260, 3), dtype=jnp.float32)
    out1 = jax.block_until_ready(chamfer_distance(x1, y1, tp1=64, tp2=128))
    ref1 = _chamfer_reference(x1, y1)
    assert out1.shape == (2,), out1.shape
    assert jnp.allclose(out1, ref1, atol=1e-5, rtol=1e-5), (out1, ref1)

    # Test 2: D=8 -> fused-Gram MXU path; P2 > P1 triggers the cloud swap.
    x2 = jax.random.normal(ks[2], (2, 16, 8), dtype=jnp.float32)
    y2 = jax.random.normal(ks[3], (2, 24, 8), dtype=jnp.float32)
    out2 = jax.block_until_ready(chamfer_distance(x2, y2))
    ref2 = _chamfer_reference(x2, y2)
    assert jnp.allclose(out2, ref2, atol=2e-4, rtol=2e-4), (out2, ref2)

    # Test 3: larger D, default (large) tiles, lane padding on the smaller cloud.
    x3 = jax.random.normal(ks[4], (2, 72, 32), dtype=jnp.float32)
    y3 = jax.random.normal(ks[5], (2, 40, 32), dtype=jnp.float32)
    out3 = jax.block_until_ready(chamfer_distance(x3, y3))
    ref3 = _chamfer_reference(x3, y3)
    assert jnp.allclose(out3, ref3, atol=2e-4, rtol=2e-4), (out3, ref3)

    # Reduction variants.
    outm = jax.block_until_ready(chamfer_distance(x1, y1, reduction='mean',
                                                  tp1=64, tp2=128))
    assert jnp.allclose(outm, jnp.mean(ref1), atol=1e-5, rtol=1e-5), (outm,)
    outs = jax.block_until_ready(chamfer_distance(x2, y2, reduction='sum'))
    assert jnp.allclose(outs, jnp.sum(ref2), atol=2e-4, rtol=2e-4), (outs,)

    print("KERNEL_OK")
</pallas_src>

<mosaic_0001>
module attributes {stable_mosaic.version = 11 : i64} {
  func.func @_chamfer_kernel(%arg0: i32, %arg1: i32, %arg2: i32, %arg3: memref<1x64x3xf32, #tpu.memory_space<vmem>>, %arg4: memref<1x3x128xf32, #tpu.memory_space<vmem>>, %arg5: memref<1x1x1xf32, #tpu.memory_space<vmem>>, %arg6: memref<64x1xf32, #tpu.memory_space<vmem>>, %arg7: memref<3x128xf32, #tpu.memory_space<vmem>>, %arg8: memref<1x1xf32, #tpu.memory_space<vmem>>, %arg9: memref<1x1xf32, #tpu.memory_space<vmem>>) attributes {dimension_semantics = [#tpu.dimension_semantics<parallel>, #tpu.dimension_semantics<arbitrary>, #tpu.dimension_semantics<arbitrary>], iteration_bounds = array<i64: 2, 5, 3>, scalar_prefetch = 0 : i64, scratch_operands = 4 : i64, tpu.core_type = #tpu.core_type<tc>, window_params = [{transform_indices = @transform_0, window_bounds = array<i64: 1, 64, 3>}, {transform_indices = @transform_1, window_bounds = array<i64: 1, 3, 128>}, {transform_indices = @transform_2, window_bounds = array<i64: 1, 1, 1>}]} {
    %c0 = arith.constant 0 : index
    %c0_0 = arith.constant 0 : index
    %c0_1 = arith.constant 0 : index
    %0 = vector.load %arg3[%c0, %c0_0, %c0_1] : memref<1x64x3xf32, #tpu.memory_space<vmem>>, vector<1x64x3xf32>
    %1 = vector.shape_cast %0 : vector<1x64x3xf32> to vector<64x3xf32>
    %c0_2 = arith.constant 0 : index
    %c0_3 = arith.constant 0 : index
    %c0_4 = arith.constant 0 : index
    %2 = vector.load %arg4[%c0_2, %c0_3, %c0_4] : memref<1x3x128xf32, #tpu.memory_space<vmem>>, vector<1x3x128xf32>
    %3 = vector.shape_cast %2 : vector<1x3x128xf32> to vector<3x128xf32>
    %4 = vector.extract_strided_slice %1 {offsets = [0, 0], sizes = [64, 1], strides = [1, 1]} : vector<64x3xf32> to vector<64x1xf32>
    %5 = vector.extract_strided_slice %3 {offsets = [0, 0], sizes = [1, 128], strides = [1, 1]} : vector<3x128xf32> to vector<1x128xf32>
    %6 = vector.broadcast %4 : vector<64x1xf32> to vector<64x128xf32>
    %7 = vector.broadcast %5 : vector<1x128xf32> to vector<64x128xf32>
    %8 = arith.subf %6, %7 : vector<64x128xf32>
    %9 = arith.mulf %8, %8 : vector<64x128xf32>
    %10 = vector.extract_strided_slice %1 {offsets = [0, 1], sizes = [64, 1], strides = [1, 1]} : vector<64x3xf32> to vector<64x1xf32>
    %11 = vector.extract_strided_slice %3 {offsets = [1, 0], sizes = [1, 128], strides = [1, 1]} : vector<3x128xf32> to vector<1x128xf32>
    %12 = vector.broadcast %10 : vector<64x1xf32> to vector<64x128xf32>
    %13 = vector.broadcast %11 : vector<1x128xf32> to vector<64x128xf32>
    %14 = arith.subf %12, %13 : vector<64x128xf32>
    %15 = arith.mulf %14, %14 : vector<64x128xf32>
    %16 = arith.addf %9, %15 : vector<64x128xf32>
    %17 = vector.extract_strided_slice %1 {offsets = [0, 2], sizes = [64, 1], strides = [1, 1]} : vector<64x3xf32> to vector<64x1xf32>
    %18 = vector.extract_strided_slice %3 {offsets = [2, 0], sizes = [1, 128], strides = [1, 1]} : vector<3x128xf32> to vector<1x128xf32>
    %19 = vector.broadcast %17 : vector<64x1xf32> to vector<64x128xf32>
    %20 = vector.broadcast %18 : vector<1x128xf32> to vector<64x128xf32>
    %21 = arith.subf %19, %20 : vector<64x128xf32>
    %22 = arith.mulf %21, %21 : vector<64x128xf32>
    %23 = arith.addf %16, %22 : vector<64x128xf32>
    %cst = arith.constant dense<0x7F800000> : vector<64xf32>
    %24 = vector.multi_reduction <minimumf>, %23, %cst [1] : vector<64x128xf32> to vector<64xf32>
    %25 = vector.shape_cast %24 : vector<64xf32> to vector<64x1xf32>
    %c0_i32 = arith.constant 0 : i32
    %26 = arith.cmpi eq, %arg2, %c0_i32 : i32
    %cst_5 = arith.constant 1.000000e+30 : f32
    %27 = vector.broadcast %cst_5 : f32 to vector<64x1xf32>
    %c0_6 = arith.constant 0 : index
    %c0_7 = arith.constant 0 : index
    %28 = vector.load %arg6[%c0_6, %c0_7] : memref<64x1xf32, #tpu.memory_space<vmem>>, vector<64x1xf32>
    %29 = arith.select %26, %27, %28 : vector<64x1xf32>
    %30 = arith.minimumf %29, %25 : vector<64x1xf32>
    %c0_8 = arith.constant 0 : index
    %c0_9 = arith.constant 0 : index
    %31 = vector.load %arg6[%c0_8, %c0_9] : memref<64x1xf32, #tpu.memory_space<vmem>>, vector<64x1xf32>
    tpu.vector_store %arg6[%c0_8, %c0_9], %30 {strides = array<i32>} : memref<64x1xf32, #tpu.memory_space<vmem>>, vector<64x1xf32>,
    %cst_10 = arith.constant dense<0x7F800000> : vector<128xf32>
    %32 = vector.multi_reduction <minimumf>, %23, %cst_10 [0] : vector<64x128xf32> to vector<128xf32>
    %33 = vector.shape_cast %32 : vector<128xf32> to vector<1x128xf32>
    %c0_i32_11 = arith.constant 0 : i32
    %34 = arith.cmpi eq, %arg1, %c0_i32_11 : i32
    %cst_12 = arith.constant 1.000000e+30 : f32
    %35 = vector.broadcast %cst_12 : f32 to vector<1x128xf32>
    %36 = arith.index_cast %arg2 : i32 to index
    %c0_13 = arith.constant 0 : index
    %37 = vector.load %arg7[%36, %c0_13] : memref<3x128xf32, #tpu.memory_space<vmem>>, vector<1x128xf32>
    %38 = arith.select %34, %35, %37 : vector<1x128xf32>
    %39 = arith.minimumf %38, %33 : vector<1x128xf32>
    %40 = arith.index_cast %arg2 : i32 to index
    %c0_14 = arith.constant 0 : index
    %41 = vector.load %arg7[%40, %c0_14] : memref<3x128xf32, #tpu.memory_space<vmem>>, vector<1x128xf32>
    tpu.vector_store %arg7[%40, %c0_14], %39 {strides = array<i32>} : memref<3x128xf32, #tpu.memory_space<vmem>>, vector<1x128xf32>,
    %c2_i32 = arith.constant 2 : i32
    %42 = arith.cmpi eq, %arg2, %c2_i32 : i32
    %43 = arith.extui %42 : i1 to i32
    %c0_i32_15 = arith.constant 0 : i32
    %44 = arith.cmpi ne, %43, %c0_i32_15 : i32
    scf.if %44 {
      %cst_20 = arith.constant 0.000000e+00 : f32
      %53 = vector.broadcast %cst_20 : f32 to vector<64x1xf32>
      %54 = arith.maximumf %30, %53 : vector<64x1xf32>
      %55 = math.sqrt %54 : vector<64x1xf32>
      %c64_i32 = arith.constant 64 : i32
      %56 = arith.muli %arg1, %c64_i32 : i32
      %57 = tpu.iota {dimensions = array<i32: 0>} : vector<64x1xi32>
      %58 = vector.broadcast %56 : i32 to vector<64x1xi32>
      %59 = arith.addi %58, %57 : vector<64x1xi32>
      %c300_i32 = arith.constant 300 : i32
      %60 = vector.broadcast %c300_i32 : i32 to vector<64x1xi32>
      %61 = arith.cmpi slt, %59, %60 : vector<64x1xi32>
      %cst_21 = arith.constant 0.000000e+00 : f32
      %62 = vector.broadcast %cst_21 : f32 to vector<64x1xf32>
      %63 = arith.select %61, %55, %62 : vector<64x1xi1>, vector<64x1xf32>
      %64 = vector.shape_cast %63 : vector<64x1xf32> to vector<1x64x1xf32>
      %cst_22 = arith.constant dense<0.000000e+00> : vector<1xf32>
      %65 = vector.multi_reduction <add>, %64, %cst_22 [1, 2] : vector<1x64x1xf32> to vector<1xf32>
      %66 = vector.shape_cast %65 : vector<1xf32> to vector<1x1x1xf32>
      %67 = vector.extract %66[0, 0, 0] : f32 from vector<1x1x1xf32>
      %68 = vector.broadcast %67 : f32 to vector<1x1xf32>
      %c0_i32_23 = arith.constant 0 : i32
      %69 = arith.cmpi eq, %arg1, %c0_i32_23 : i32
      %cst_24 = arith.constant 0.000000e+00 : f32
      %70 = vector.broadcast %cst_24 : f32 to vector<1x1xf32>
      %c0_25 = arith.constant 0 : index
      %c0_26 = arith.constant 0 : index
      %71 = vector.load %arg8[%c0_25, %c0_26] : memref<1x1xf32, #tpu.memory_space<vmem>>, vector<1x1xf32>
      %72 = arith.select %69, %70, %71 : vector<1x1xf32>
      %73 = arith.addf %72, %68 : vector<1x1xf32>
      %c0_27 = arith.constant 0 : index
      %c0_28 = arith.constant 0 : index
      %74 = vector.load %arg8[%c0_27, %c0_28] : memref<1x1xf32, #tpu.memory_space<vmem>>, vector<1x1xf32>
      tpu.vector_store %arg8[%c0_27, %c0_28], %73 {strides = array<i32>} : memref<1x1xf32, #tpu.memory_space<vmem>>, vector<1x1xf32>,
    } else {
    }
    %c4_i32 = arith.constant 4 : i32
    %45 = arith.cmpi eq, %arg1, %c4_i32 : i32
    %46 = arith.extui %45 : i1 to i32
    %c0_i32_16 = arith.constant 0 : i32
    %47 = arith.cmpi ne, %46, %c0_i32_16 : i32
    scf.if %47 {
      %cst_20 = arith.constant 0.000000e+00 : f32
      %53 = vector.broadcast %cst_20 : f32 to vector<1x128xf32>
      %54 = arith.maximumf %39, %53 : vector<1x128xf32>
      %55 = math.sqrt %54 : vector<1x128xf32>
      %c128_i32 = arith.constant 128 : i32
      %56 = arith.muli %arg2, %c128_i32 : i32
      %57 = tpu.iota {dimensions = array<i32: 1>} : vector<1x128xi32>
      %58 = vector.broadcast %56 : i32 to vector<1x128xi32>
      %59 = arith.addi %58, %57 : vector<1x128xi32>
      %c260_i32 = arith.constant 260 : i32
      %60 = vector.broadcast %c260_i32 : i32 to vector<1x128xi32>
      %61 = arith.cmpi slt, %59, %60 : vector<1x128xi32>
      %cst_21 = arith.constant 0.000000e+00 : f32
      %62 = vector.broadcast %cst_21 : f32 to vector<1x128xf32>
      %63 = arith.select %61, %55, %62 : vector<1x128xi1>, vector<1x128xf32>
      %64 = vector.shape_cast %63 : vector<1x128xf32> to vector<1x1x128xf32>
      %cst_22 = arith.constant dense<0.000000e+00> : vector<1xf32>
      %65 = vector.multi_reduction <add>, %64, %cst_22 [1, 2] : vector<1x1x128xf32> to vector<1xf32>
      %66 = vector.shape_cast %65 : vector<1xf32> to vector<1x1x1xf32>
      %67 = vector.extract %66[0, 0, 0] : f32 from vector<1x1x1xf32>
      %68 = vector.broadcast %67 : f32 to vector<1x1xf32>
      %c0_i32_23 = arith.constant 0 : i32
      %69 = arith.cmpi eq, %arg2, %c0_i32_23 : i32
      %cst_24 = arith.constant 0.000000e+00 : f32
      %70 = vector.broadcast %cst_24 : f32 to vector<1x1xf32>
      %c0_25 = arith.constant 0 : index
      %c0_26 = arith.constant 0 : index
      %71 = vector.load %arg9[%c0_25, %c0_26] : memref<1x1xf32, #tpu.memory_space<vmem>>, vector<1x1xf32>
      %72 = arith.select %69, %70, %71 : vector<1x1xf32>
      %73 = arith.addf %72, %68 : vector<1x1xf32>
      %c0_27 = arith.constant 0 : index
      %c0_28 = arith.constant 0 : index
      %74 = vector.load %arg9[%c0_27, %c0_28] : memref<1x1xf32, #tpu.memory_space<vmem>>, vector<1x1xf32>
      tpu.vector_store %arg9[%c0_27, %c0_28], %73 {strides = array<i32>} : memref<1x1xf32, #tpu.memory_space<vmem>>, vector<1x1xf32>,
    } else {
    }
    %c4_i32_17 = arith.constant 4 : i32
    %48 = arith.cmpi eq, %arg1, %c4_i32_17 : i32
    %c2_i32_18 = arith.constant 2 : i32
    %49 = arith.cmpi eq, %arg2, %c2_i32_18 : i32
    %50 = arith.andi %48, %49 : i1
    %51 = arith.extui %50 : i1 to i32
    %c0_i32_19 = arith.constant 0 : i32
    %52 = arith.cmpi ne, %51, %c0_i32_19 : i32
    scf.if %52 {
      %c0_20 = arith.constant 0 : index
      %c0_21 = arith.constant 0 : index
      %53 = vector.load %arg8[%c0_20, %c0_21] : memref<1x1xf32, #tpu.memory_space<vmem>>, vector<1x1xf32>
      %cst_22 = arith.constant 0.00333333341 : f32
      %54 = vector.broadcast %cst_22 : f32 to vector<1x1xf32>
      %55 = arith.mulf %53, %54 : vector<1x1xf32>
      %c0_23 = arith.constant 0 : index
      %c0_24 = arith.constant 0 : index
      %56 = vector.load %arg9[%c0_23, %c0_24] : memref<1x1xf32, #tpu.memory_space<vmem>>, vector<1x1xf32>
      %cst_25 = arith.constant 0.00384615385 : f32
      %57 = vector.broadcast %cst_25 : f32 to vector<1x1xf32>
      %58 = arith.mulf %56, %57 : vector<1x1xf32>
      %59 = arith.addf %55, %58 : vector<1x1xf32>
      %cst_26 = arith.constant 5.000000e-01 : f32
      %60 = vector.broadcast %cst_26 : f32 to vector<1x1xf32>
      %61 = arith.mulf %59, %60 : vector<1x1xf32>
      %c0_27 = arith.constant 0 : index
      %c0_28 = arith.constant 0 : index
      %c0_29 = arith.constant 0 : index
      %62 = vector.load %arg5[%c0_27, %c0_28, %c0_29] : memref<1x1x1xf32, #tpu.memory_space<vmem>>, vector<1x1x1xf32>
      %63 = vector.shape_cast %62 : vector<1x1x1xf32> to vector<1x1xf32>
      %64 = vector.shape_cast %61 : vector<1x1xf32> to vector<1x1x1xf32>
      tpu.vector_store %arg5[%c0_27, %c0_28, %c0_29], %64 {strides = array<i32>} : memref<1x1x1xf32, #tpu.memory_space<vmem>>, vector<1x1x1xf32>,
    } else {
    }
    return
  }
  func.func @transform_0(%arg0: i32, %arg1: i32, %arg2: i32) -> (i32, i32, i32) {
    %c0_i32 = arith.constant 0 : i32
    %c0_i32_0 = arith.constant 0 : i32
    return %arg0, %arg1, %c0_i32 : i32, i32, i32
  }
  func.func @transform_1(%arg0: i32, %arg1: i32, %arg2: i32) -> (i32, i32, i32) {
    %c0_i32 = arith.constant 0 : i32
    %c0_i32_0 = arith.constant 0 : i32
    return %arg0, %c0_i32, %arg2 : i32, i32, i32
  }
  func.func @transform_2(%arg0: i32, %arg1: i32, %arg2: i32) -> (i32, i32, i32) {
    %c0_i32 = arith.constant 0 : i32
    %c0_i32_0 = arith.constant 0 : i32
    %c0_i32_1 = arith.constant 0 : i32
    return %arg0, %c0_i32, %c0_i32_0 : i32, i32, i32
  }
}

</mosaic_0001>

<llo_original>
// kernel: tpu_custom_call.1
$region0: #{tpu_custom_call.1}
  #allocation0 [shape = 'u32[]', space=smem, size = 0x4, offset = 0x4, fixed_abs, tag = 'smem constant byte address 0x4 - core index']
  #allocation1 [shape = 'u32[144,128]{1,0:T(1,128)}', space=vmem, size = 0x12000, scoped, tag = 'internal scratch']
  #allocation2 [shape = 'f32[64,1]{1,0:T(8,128)}', space=vmem, size = 0x8000, scoped, tag = 'scratch operand']
  #allocation3 [shape = 'f32[3,128]{1,0:T(4,128)}', space=vmem, size = 0x800, scoped, tag = 'scratch operand']
  #allocation4 [shape = 'f32[1,1]{1,0:T(1,128)}', space=vmem, size = 0x200, scoped, tag = 'scratch operand']
  #allocation5 [shape = 'f32[1,1]{1,0:T(1,128)}', space=vmem, size = 0x200, scoped, tag = 'scratch operand']
  %s0 = inlined_call_operand.vmem [shape: f32[2,320,3], index: 0, kind: input, shape index: {}]
  %s1 = inlined_call_operand.vmem [shape: f32[2,3,384], index: 1, kind: input, shape index: {}]
  %s2 = inlined_call_operand.vmem [shape: f32[2,1,1], index: 2, kind: output, shape index: {}]
  %s3 = sld [smem:[#allocation0]]
  $region53: #{tpu_custom_call.1} parent=0
    _
  %s5 = ssub.s32 1, %s3
  %s6 = scalar_select 0, %s5, %s3
  loop: start=0, step=1, limit=32
  $region2: #{tpu_custom_call.1} parent=0 // loop_pre_header
    _
  $region3: #{tpu_custom_call.1} parent=0 // loop_header
    %s8 = sphi 0, %s12
    %p9 = scmp.ge.s32.totalorder %s8, 32
    %s15 = sphi 0, %s34
    %s16 = sphi 0, %s30
    %s17 = sphi 0, %s26
    %s18 = sphi 0, %s15
    %s19 = sphi 0, %s16
    %s20 = sphi 0, %s17
    %s21 = sphi 0, %s18
    %s22 = sphi 0, %s19
    %s23 = sphi 0, %s20
    %s39 = sphi 0, %s41
    %s42 = sphi 0, %s39
    %s43 = sphi 0, %s42
    %s59 = sphi 0, %s43
    %s67 = sphi 0, %s69
    %s70 = sphi 0, %s67
    %s71 = sphi 0, %s70
    %s87 = sphi 0, %s71
    %s93 = sphi 0, %s95
    %s96 = sphi 0, %s93
    %s97 = sphi 0, %s96
    %s113 = sphi 0, %s97
  $region4: #{tpu_custom_call.1} parent=0 // loop_header_branch
    %11 = sbr.rel (%p9) target = $region8
  $region5: #{tpu_custom_call.1} parent=0 // loop_body
    %s13 = ssub.s32 %s8, 1
    %s14 = ssub.s32 %s8, 2
    %s24 = sadd.s32 1, %s17
    %p25 = scmp.ge.s32.totalorder %s24, 3
    %s26 = scalar_select %p25, 0, %s24
    %s27 = sadd.s32 1, %s16
    %s28 = scalar_select %p25, %s27, %s16
    %p29 = scmp.ge.s32.totalorder %s28, 5
    %s30 = scalar_select %p29, 0, %s28
    %s31 = sadd.s32 1, %s15
    %s32 = scalar_select %p29, %s31, %s15
    %p33 = scmp.ge.s32.totalorder %s32, 2
    %s34 = scalar_select %p33, 0, %s32
    %s35 = ssub.s32 %s15, %s34
    %s36 = ssub.s32 %s16, %s30
    %s37 = sor.u32 %s35, %s36
    %p38 = scmp.eq.s32.totalorder %s37, 0
    %s40 = sadd.s32 %s39, 1
    %s41 = scalar_select %p38, %s39, %s40
    %p44 = pneg %p38
    %p45 = scmp.eq.s32.totalorder %s8, 29
    %p46 = por %p44, %p45
    %p47 = scmp.ne.s32.totalorder %s39, %s42
    %p48 = scmp.eq.s32.totalorder %s8, 0
    %p49 = por %p47, %p48
    %p50 = scmp.ne.s32.totalorder %s39, %s42
    %p51 = scmp.eq.s32.totalorder %s13, 29
    %p52 = por %p50, %p51
    %p53 = scmp.ne.s32.totalorder %s42, %s43
    %p54 = scmp.eq.s32.totalorder %s13, 0
    %p55 = por %p53, %p54
    %p56 = scmp.ne.s32.totalorder %s42, %s43
    %p57 = scmp.eq.s32.totalorder %s14, 29
    %p58 = por %p56, %p57
    %p60 = scmp.ne.s32.totalorder %s43, %s59
    %p61 = scmp.eq.s32.totalorder %s14, 0
    %p62 = por %p60, %p61
    %s63 = ssub.s32 %s15, %s34
    %s64 = ssub.s32 %s17, %s26
    %s65 = sor.u32 %s63, %s64
    %p66 = scmp.eq.s32.totalorder %s65, 0
    %s68 = sadd.s32 %s67, 1
    %s69 = scalar_select %p66, %s67, %s68
    %p72 = pneg %p66
    %p73 = scmp.eq.s32.totalorder %s8, 29
    %p74 = por %p72, %p73
    %p75 = scmp.ne.s32.totalorder %s67, %s70
    %p76 = scmp.eq.s32.totalorder %s8, 0
    %p77 = por %p75, %p76
    %p78 = scmp.ne.s32.totalorder %s67, %s70
    %p79 = scmp.eq.s32.totalorder %s13, 29
    %p80 = por %p78, %p79
    %p81 = scmp.ne.s32.totalorder %s70, %s71
    %p82 = scmp.eq.s32.totalorder %s13, 0
    %p83 = por %p81, %p82
    %p84 = scmp.ne.s32.totalorder %s70, %s71
    %p85 = scmp.eq.s32.totalorder %s14, 29
    %p86 = por %p84, %p85
    %p88 = scmp.ne.s32.totalorder %s71, %s87
    %p89 = scmp.eq.s32.totalorder %s14, 0
    %p90 = por %p88, %p89
    %s91 = ssub.s32 %s15, %s34
    %p92 = scmp.eq.s32.totalorder %s91, 0
    %s94 = sadd.s32 %s93, 1
    %s95 = scalar_select %p92, %s93, %s94
    %p98 = pneg %p92
    %p99 = scmp.eq.s32.totalorder %s8, 29
    %p100 = por %p98, %p99
    %p101 = scmp.ne.s32.totalorder %s93, %s96
    %p102 = scmp.eq.s32.totalorder %s8, 0
    %p103 = por %p101, %p102
    %p104 = scmp.ne.s32.totalorder %s93, %s96
    %p105 = scmp.eq.s32.totalorder %s13, 29
    %p106 = por %p104, %p105
    %p107 = scmp.ne.s32.totalorder %s96, %s97
    %p108 = scmp.eq.s32.totalorder %s13, 0
    %p109 = por %p107, %p108
    %p110 = scmp.ne.s32.totalorder %s96, %s97
    %p111 = scmp.eq.s32.totalorder %s14, 29
    %p112 = por %p110, %p111
    %p114 = scmp.ne.s32.totalorder %s97, %s113
    %p115 = scmp.eq.s32.totalorder %s14, 0
    %p116 = por %p114, %p115
    %p117 = scmp.le.s32.totalorder 1, %s8
    %p118 = scmp.lt.s32.totalorder %s8, 31
    %p119 = pnand %p117, %p118
    %p120 = pneg %p119
    // Predicated region
    $region9: #{tpu_custom_call.1} parent=5 // pred_check
      _
    $region10: #{tpu_custom_call.1} parent=5 // pred_check_branch
      %122 = sbr.rel (%p119) target = $region12
    $region11: #{tpu_custom_call.1} parent=5 // pred_region
      %s123 = ssub.s32 %s8, 1
    $region12: #{tpu_custom_call.1} parent=5 // pred_fallthru
      _
    %p124 = scmp.lt.s32.totalorder %s8, 30
    // Predicated region
    $region13: #{tpu_custom_call.1} parent=5 // pred_check
      %p125 = pneg %p124
    $region14: #{tpu_custom_call.1} parent=5 // pred_check_branch
      %127 = sbr.rel (%p125) target = $region16
    $region15: #{tpu_custom_call.1} parent=5 // pred_region
      // Predicated region
      $region17: #{tpu_custom_call.1} parent=15 // pred_check
        %p128 = pneg %p49
      $region18: #{tpu_custom_call.1} parent=15 // pred_check_branch
        %130 = sbr.rel (%p128) target = $region20
      $region19: #{tpu_custom_call.1} parent=15 // pred_region
        %s131 = smul.u32 8, %s16
        %p132 = scmp.lt.s32.totalorder %s15, 1
        %s133 = scalar_select %p132, %s15, 1
        %p134 = scmp.lt.s32.totalorder %s131, 39
        %s135 = scalar_select %p134, %s131, 39
        %s136 = smul.addr %s133, 40
        %s137 = sadd.s32 %s135, %s136
        %s138 = smul.addr %s137, 8
        %s139 = scalar_lea.vmem %s0, %s138
        %s140 = smul.u32 8, %s16
      $region20: #{tpu_custom_call.1} parent=15 // pred_fallthru
        _
      // Predicated region
      $region21: #{tpu_custom_call.1} parent=15 // pred_check
        %p141 = pneg %p77
      $region22: #{tpu_custom_call.1} parent=15 // pred_check_branch
        %143 = sbr.rel (%p141) target = $region24
      $region23: #{tpu_custom_call.1} parent=15 // pred_region
        %p144 = scmp.lt.s32.totalorder %s15, 1
        %s145 = scalar_select %p144, %s15, 1
        %p146 = scmp.lt.s32.totalorder %s17, 2
        %s147 = scalar_select %p146, %s17, 2
        %s148 = smul.addr %s145, 3
        %s149 = sadd.s32 %s147, %s148
        %s150 = smul.addr %s149, 4
        %s151 = scalar_lea.vmem %s1, %s150
      $region24: #{tpu_custom_call.1} parent=15 // pred_fallthru
        _
    $region16: #{tpu_custom_call.1} parent=5 // pred_fallthru
      _
    %p152 = scmp.le.s32.totalorder 1, %s8
    %p153 = scmp.lt.s32.totalorder %s8, 31
    %p154 = pnand %p152, %p153
    %p155 = pneg %p154
    // Predicated region
    $region25: #{tpu_custom_call.1} parent=5 // pred_check
      _
    $region26: #{tpu_custom_call.1} parent=5 // pred_check_branch
      %157 = sbr.rel (%p154) target = $region28
    $region27: #{tpu_custom_call.1} parent=5 // pred_region
      %s158 = ssub.s32 %s8, 1
      %s159 = smul.u32 8, %s19
      %p160 = scmp.lt.s32.totalorder %s18, 1
      %s161 = scalar_select %p160, %s18, 1
      %p162 = scmp.lt.s32.totalorder %s159, 39
      %s163 = scalar_select %p162, %s159, 39
      %s164 = smul.addr %s161, 40
      %s165 = sadd.s32 %s163, %s164
      %s166 = smul.addr %s165, 8
      %s167 = scalar_lea.vmem %s0, %s166
      %p168 = pneg %p55
      %p169 = pneg %p52
      %p170 = scmp.lt.s32.totalorder %s18, 1
      %s171 = scalar_select %p170, %s18, 1
      %p172 = scmp.lt.s32.totalorder %s20, 2
      %s173 = scalar_select %p172, %s20, 2
      %s174 = smul.addr %s171, 3
      %s175 = sadd.s32 %s173, %s174
      %s176 = smul.addr %s175, 4
      %s177 = scalar_lea.vmem %s1, %s176
      %p178 = pneg %p83
      %p179 = pneg %p80
      %p180 = pneg %p109
      %p181 = pneg %p106
      %p182 = scmp.lt.s32.totalorder %s18, 1
      %s183 = scalar_select %p182, %s18, 1
      %s184 = scalar_lea.vmem %s2, %s183
      %s185 = smul.u32 8, %s19
      %p186 = scmp.lt.s32.totalorder %s18, 1
      %s187 = scalar_select %p186, %s18, 1
      %p188 = scmp.lt.s32.totalorder %s185, 39
      %s189 = scalar_select %p188, %s185, 39
      %s190 = smul.addr %s187, 40
      %s191 = sadd.s32 %s189, %s190
      %s192 = smul.addr %s191, 8
      %s193 = scalar_lea.vmem %s0, %s192
      %s194 = smul.u32 8, %s19
      %p195 = scmp.lt.s32.totalorder %s18, 1
      %s196 = scalar_select %p195, %s18, 1
      %p197 = scmp.lt.s32.totalorder %s20, 2
      %s198 = scalar_select %p197, %s20, 2
      %s199 = smul.addr %s196, 3
      %s200 = sadd.s32 %s198, %s199
      %s201 = smul.addr %s200, 4
      %s202 = scalar_lea.vmem %s1, %s201
      %p203 = scmp.lt.s32.totalorder %s18, 1
      %s204 = scalar_select %p203, %s18, 1
      %s205 = scalar_lea.vmem %s2, %s204
      %v206 = vld [vmem:[%s193] sm:$0xff]
      %v207 = vld [vmem:[%s193 + $0x8] sm:$0xff]
      %v208 = vld [vmem:[%s193 + $0x10] sm:$0xff]
      %v209 = vld [vmem:[%s193 + $0x18] sm:$0xff]
      %v210 = vld [vmem:[%s193 + $0x20] sm:$0xff]
      %v211 = vld [vmem:[%s193 + $0x28] sm:$0xff]
      %v212 = vld [vmem:[%s193 + $0x30] sm:$0xff]
      %v213 = vld [vmem:[%s193 + $0x38] sm:$0xff]
      %v214 = vld [vmem:[%s202] sm:$0x7]
      %216 = vset.pattern.permute.xlu0 0
      %217 = vperm.xlu0 %216, %v206
      %v218 = vpop.permute.xlu0 %217
      %221 = vset.pattern.permute.xlu0 0
      %222 = vperm.xlu0 %221, %v207
      %v223 = vpop.permute.xlu0 %222
      %226 = vset.pattern.permute.xlu0 0
      %227 = vperm.xlu0 %226, %v208
      %v228 = vpop.permute.xlu0 %227
      %231 = vset.pattern.permute.xlu0 0
      %232 = vperm.xlu0 %231, %v209
      %v233 = vpop.permute.xlu0 %232
      %236 = vset.pattern.permute.xlu0 0
      %237 = vperm.xlu0 %236, %v210
      %v238 = vpop.permute.xlu0 %237
      %241 = vset.pattern.permute.xlu0 0
      %242 = vperm.xlu0 %241, %v211
      %v243 = vpop.permute.xlu0 %242
      %246 = vset.pattern.permute.xlu0 0
      %247 = vperm.xlu0 %246, %v212
      %v248 = vpop.permute.xlu0 %247
      %251 = vset.pattern.permute.xlu0 0
      %252 = vperm.xlu0 %251, %v213
      %v253 = vpop.permute.xlu0 %252
      %v255 = vlaneseq
      %v256 = vshrl.u32 %v255, 7
      %v257 = vsub.s32 0, %v256
      %v258 = vrot.slane %v214, %v257
      %v259 = vsub.f32 %v218, %v258
      %v260 = vsub.f32 %v223, %v258
      %v261 = vsub.f32 %v228, %v258
      %v262 = vsub.f32 %v233, %v258
      %v263 = vsub.f32 %v238, %v258
      %v264 = vsub.f32 %v243, %v258
      %v265 = vsub.f32 %v248, %v258
      %v266 = vsub.f32 %v253, %v258
      %v267 = vmul.f32 %v259, %v259
      %v268 = vmul.f32 %v260, %v260
      %v269 = vmul.f32 %v261, %v261
      %v270 = vmul.f32 %v262, %v262
      %v271 = vmul.f32 %v263, %v263
      %v272 = vmul.f32 %v264, %v264
      %v273 = vmul.f32 %v265, %v265
      %v274 = vmul.f32 %v266, %v266
      %275 = vset.pattern.permute.xlu0 1
      %276 = vperm.xlu0 %275, %v206
      %v277 = vpop.permute.xlu0 %276
      %279 = vset.pattern.permute.xlu0 1
      %280 = vperm.xlu0 %279, %v207
      %v281 = vpop.permute.xlu0 %280
      %283 = vset.pattern.permute.xlu0 1
      %284 = vperm.xlu0 %283, %v208
      %v285 = vpop.permute.xlu0 %284
      %287 = vset.pattern.permute.xlu0 1
      %288 = vperm.xlu0 %287, %v209
      %v289 = vpop.permute.xlu0 %288
      %291 = vset.pattern.permute.xlu0 1
      %292 = vperm.xlu0 %291, %v210
      %v293 = vpop.permute.xlu0 %292
      %295 = vset.pattern.permute.xlu0 1
      %296 = vperm.xlu0 %295, %v211
      %v297 = vpop.permute.xlu0 %296
      %299 = vset.pattern.permute.xlu0 1
      %300 = vperm.xlu0 %299, %v212
      %v301 = vpop.permute.xlu0 %300
      %303 = vset.pattern.permute.xlu0 1
      %304 = vperm.xlu0 %303, %v213
      %v305 = vpop.permute.xlu0 %304
      %v307 = vlaneseq
      %v308 = vshrl.u32 %v307, 7
      %v309 = vsub.s32 1, %v308
      %v310 = vrot.slane %v214, %v309
      %v311 = vsub.f32 %v277, %v310
      %v312 = vsub.f32 %v281, %v310
      %v313 = vsub.f32 %v285, %v310
      %v314 = vsub.f32 %v289, %v310
      %v315 = vsub.f32 %v293, %v310
      %v316 = vsub.f32 %v297, %v310
      %v317 = vsub.f32 %v301, %v310
      %v318 = vsub.f32 %v305, %v310
      %v319 = vmul.f32 %v311, %v311
      %v320 = vmul.f32 %v312, %v312
      %v321 = vmul.f32 %v313, %v313
      %v322 = vmul.f32 %v314, %v314
      %v323 = vmul.f32 %v315, %v315
      %v324 = vmul.f32 %v316, %v316
      %v325 = vmul.f32 %v317, %v317
      %v326 = vmul.f32 %v318, %v318
      %v327 = vadd.f32 %v267, %v319
      %v328 = vadd.f32 %v268, %v320
      %v329 = vadd.f32 %v269, %v321
      %v330 = vadd.f32 %v270, %v322
      %v331 = vadd.f32 %v271, %v323
      %v332 = vadd.f32 %v272, %v324
      %v333 = vadd.f32 %v273, %v325
      %v334 = vadd.f32 %v274, %v326
      %335 = vset.pattern.permute.xlu0 2
      %336 = vperm.xlu0 %335, %v206
      %v337 = vpop.permute.xlu0 %336
      %339 = vset.pattern.permute.xlu0 2
      %340 = vperm.xlu0 %339, %v207
      %v341 = vpop.permute.xlu0 %340
      %343 = vset.pattern.permute.xlu0 2
      %344 = vperm.xlu0 %343, %v208
      %v345 = vpop.permute.xlu0 %344
      %347 = vset.pattern.permute.xlu0 2
      %348 = vperm.xlu0 %347, %v209
      %v349 = vpop.permute.xlu0 %348
      %351 = vset.pattern.permute.xlu0 2
      %352 = vperm.xlu0 %351, %v210
      %v353 = vpop.permute.xlu0 %352
      %355 = vset.pattern.permute.xlu0 2
      %356 = vperm.xlu0 %355, %v211
      %v357 = vpop.permute.xlu0 %356
      %359 = vset.pattern.permute.xlu0 2
      %360 = vperm.xlu0 %359, %v212
      %v361 = vpop.permute.xlu0 %360
      %363 = vset.pattern.permute.xlu0 2
      %364 = vperm.xlu0 %363, %v213
      %v365 = vpop.permute.xlu0 %364
      %v367 = vlaneseq
      %v368 = vshrl.u32 %v367, 7
      %v369 = vsub.s32 2, %v368
      %v370 = vrot.slane %v214, %v369
      %v371 = vsub.f32 %v337, %v370
      %v372 = vsub.f32 %v341, %v370
      %v373 = vsub.f32 %v345, %v370
      %v374 = vsub.f32 %v349, %v370
      %v375 = vsub.f32 %v353, %v370
      %v376 = vsub.f32 %v357, %v370
      %v377 = vsub.f32 %v361, %v370
      %v378 = vsub.f32 %v365, %v370
      %v379 = vmul.f32 %v371, %v371
      %v380 = vmul.f32 %v372, %v372
      %v381 = vmul.f32 %v373, %v373
      %v382 = vmul.f32 %v374, %v374
      %v383 = vmul.f32 %v375, %v375
      %v384 = vmul.f32 %v376, %v376
      %v385 = vmul.f32 %v377, %v377
      %v386 = vmul.f32 %v378, %v378
      %v387 = vadd.f32 %v327, %v379
      %v388 = vadd.f32 %v328, %v380
      %v389 = vadd.f32 %v329, %v381
      %v390 = vadd.f32 %v330, %v382
      %v391 = vadd.f32 %v331, %v383
      %v392 = vadd.f32 %v332, %v384
      %v393 = vadd.f32 %v333, %v385
      %v394 = vadd.f32 %v334, %v386
      %395 = vmin.xlane.f32.xlu0 %v387
      %v396 = vpop.xlane.xlu0 %395
      %397 = vmin.xlane.f32.xlu0 %v388
      %v398 = vpop.xlane.xlu0 %397
      %399 = vmin.xlane.f32.xlu0 %v389
      %v400 = vpop.xlane.xlu0 %399
      %401 = vmin.xlane.f32.xlu0 %v390
      %v402 = vpop.xlane.xlu0 %401
      %403 = vmin.xlane.f32.xlu0 %v391
      %v404 = vpop.xlane.xlu0 %403
      %405 = vmin.xlane.f32.xlu0 %v392
      %v406 = vpop.xlane.xlu0 %405
      %407 = vmin.xlane.f32.xlu0 %v393
      %v408 = vpop.xlane.xlu0 %407
      %409 = vmin.xlane.f32.xlu0 %v394
      %v410 = vpop.xlane.xlu0 %409
      %p411 = scmp.eq.s32.totalorder %s20, 0
      %v412 = vld [vmem:[#allocation2] sm:$0xff]
      %v413 = vld [vmem:[#allocation2 + $0x8] sm:$0xff]
      %v414 = vld [vmem:[#allocation2 + $0x10] sm:$0xff]
      %v415 = vld [vmem:[#allocation2 + $0x18] sm:$0xff]
      %v416 = vld [vmem:[#allocation2 + $0x20] sm:$0xff]
      %v417 = vld [vmem:[#allocation2 + $0x28] sm:$0xff]
      %v418 = vld [vmem:[#allocation2 + $0x30] sm:$0xff]
      %v419 = vld [vmem:[#allocation2 + $0x38] sm:$0xff]
      %s420 = scalar_select %p411, 1, 0
      %v421 = vstv %s420
      %vm422 = vcmp.eq.s32.totalorder %v421, 1
      %v423 = vsel %vm422, 1e+30, %v412
      %v424 = vsel %vm422, 1e+30, %v413
      %v425 = vsel %vm422, 1e+30, %v414
      %v426 = vsel %vm422, 1e+30, %v415
      %v427 = vsel %vm422, 1e+30, %v416
      %v428 = vsel %vm422, 1e+30, %v417
      %v429 = vsel %vm422, 1e+30, %v418
      %v430 = vsel %vm422, 1e+30, %v419
      %v431 = vmin.f32 %v423, %v396
      %v432 = vmin.f32 %v424, %v398
      %v433 = vmin.f32 %v425, %v400
      %v434 = vmin.f32 %v426, %v402
      %v435 = vmin.f32 %v427, %v404
      %v436 = vmin.f32 %v428, %v406
      %v437 = vmin.f32 %v429, %v408
      %v438 = vmin.f32 %v430, %v410
      %vm439 = vcmask 7168
      %440 = vst.msk [vmem:[#allocation2] sm:$0xff] %vm439, %v431
      %441 = vst.msk [vmem:[#allocation2 + $0x8] sm:$0xff] %vm439, %v432
      %442 = vst.msk [vmem:[#allocation2 + $0x10] sm:$0xff] %vm439, %v433
      %443 = vst.msk [vmem:[#allocation2 + $0x18] sm:$0xff] %vm439, %v434
      %444 = vst.msk [vmem:[#allocation2 + $0x20] sm:$0xff] %vm439, %v435
      %445 = vst.msk [vmem:[#allocation2 + $0x28] sm:$0xff] %vm439, %v436
      %446 = vst.msk [vmem:[#allocation2 + $0x30] sm:$0xff] %vm439, %v437
      %447 = vst.msk [vmem:[#allocation2 + $0x38] sm:$0xff] %vm439, %v438
      %v448 = vmin.f32 %v387, %v391
      %v449 = vmin.f32 %v388, %v392
      %v450 = vmin.f32 %v389, %v393
      %v451 = vmin.f32 %v390, %v394
      %v452 = vmin.f32 %v448, %v449
      %v453 = vmin.f32 %v450, %v451
      %v454 = vmin.f32 %v452, %v453
      %v455 = vrot.slane %v454, 4
      %v456 = vmin.f32 %v454, %v455
      %v457 = vrot.slane %v456, 2
      %v458 = vmin.f32 %v456, %v457
      %v459 = vrot.slane %v458, 1
      %v460 = vmin.f32 %v458, %v459
      %p461 = scmp.eq.s32.totalorder %s19, 0
      %s462 = scalar_lea.vmem [#allocation3], %s20
      %v463 = vld [vmem:[%s462] sm:$0x1]
      %s464 = scalar_select %p461, 1, 0
      %v465 = vstv %s464
      %vm466 = vcmp.eq.s32.totalorder %v465, 1
      %v467 = vsel %vm466, 1e+30, %v463
      %v468 = vmin.f32 %v467, %v460
      %469 = vst [vmem:[%s462] sm:$0x1] %v468
      %p470 = scmp.eq.s32.totalorder %s20, 2
      // Predicated region
      $region29: #{tpu_custom_call.1} parent=27 // pred_check
        %p471 = pneg %p470
      $region30: #{tpu_custom_call.1} parent=27 // pred_check_branch
        %473 = sbr.rel (%p471) target = $region32
      $region31: #{tpu_custom_call.1} parent=27 // pred_region
        %v474 = vmax.f32 %v431, 0.0
        %v475 = vmax.f32 %v432, 0.0
        %v476 = vmax.f32 %v433, 0.0
        %v477 = vmax.f32 %v434, 0.0
        %v478 = vmax.f32 %v435, 0.0
        %v479 = vmax.f32 %v436, 0.0
        %v480 = vmax.f32 %v437, 0.0
        %v481 = vmax.f32 %v438, 0.0
        %v482 = vrsqrt.pop %v474
        %v483 = vmul.f32 %v474, %v482
        %vm484 = vcmp.eq.f32.partialorder %v474, inf
        %v485 = vsel %vm484, %v474, %v483
        %vm486 = vcmp.eq.f32.partialorder %v474, 0.0
        %v487 = vand.u32 %v474, 2147483648
        %v488 = vsel %vm486, %v487, %v485
        %v489 = vrsqrt.pop %v475
        %v490 = vmul.f32 %v475, %v489
        %vm491 = vcmp.eq.f32.partialorder %v475, inf
        %v492 = vsel %vm491, %v475, %v490
        %vm493 = vcmp.eq.f32.partialorder %v475, 0.0
        %v494 = vand.u32 %v475, 2147483648
        %v495 = vsel %vm493, %v494, %v492
        %v496 = vrsqrt.pop %v476
        %v497 = vmul.f32 %v476, %v496
        %vm498 = vcmp.eq.f32.partialorder %v476, inf
        %v499 = vsel %vm498, %v476, %v497
        %vm500 = vcmp.eq.f32.partialorder %v476, 0.0
        %v501 = vand.u32 %v476, 2147483648
        %v502 = vsel %vm500, %v501, %v499
        %v503 = vrsqrt.pop %v477
        %v504 = vmul.f32 %v477, %v503
        %vm505 = vcmp.eq.f32.partialorder %v477, inf
        %v506 = vsel %vm505, %v477, %v504
        %vm507 = vcmp.eq.f32.partialorder %v477, 0.0
        %v508 = vand.u32 %v477, 2147483648
        %v509 = vsel %vm507, %v508, %v506
        %v510 = vrsqrt.pop %v478
        %v511 = vmul.f32 %v478, %v510
        %vm512 = vcmp.eq.f32.partialorder %v478, inf
        %v513 = vsel %vm512, %v478, %v511
        %vm514 = vcmp.eq.f32.partialorder %v478, 0.0
        %v515 = vand.u32 %v478, 2147483648
        %v516 = vsel %vm514, %v515, %v513
        %v517 = vrsqrt.pop %v479
        %v518 = vmul.f32 %v479, %v517
        %vm519 = vcmp.eq.f32.partialorder %v479, inf
        %v520 = vsel %vm519, %v479, %v518
        %vm521 = vcmp.eq.f32.partialorder %v479, 0.0
        %v522 = vand.u32 %v479, 2147483648
        %v523 = vsel %vm521, %v522, %v520
        %v524 = vrsqrt.pop %v480
        %v525 = vmul.f32 %v480, %v524
        %vm526 = vcmp.eq.f32.partialorder %v480, inf
        %v527 = vsel %vm526, %v480, %v525
        %vm528 = vcmp.eq.f32.partialorder %v480, 0.0
        %v529 = vand.u32 %v480, 2147483648
        %v530 = vsel %vm528, %v529, %v527
        %v531 = vrsqrt.pop %v481
        %v532 = vmul.f32 %v481, %v531
        %vm533 = vcmp.eq.f32.partialorder %v481, inf
        %v534 = vsel %vm533, %v481, %v532
        %vm535 = vcmp.eq.f32.partialorder %v481, 0.0
        %v536 = vand.u32 %v481, 2147483648
        %v537 = vsel %vm535, %v536, %v534
        %s538 = smul.u32 %s19, 64
        %v539 = vlaneseq
        %v540 = vshrl.u32 %v539, 7
        %v541 = vadd.s32 %v540, 8
        %v542 = vadd.s32 %v540, 16
        %v543 = vadd.s32 %v540, 24
        %v544 = vadd.s32 %v540, 32
        %v545 = vadd.s32 %v540, 40
        %v546 = vadd.s32 %v540, 48
        %v547 = vadd.s32 %v540, 56
        %v548 = vstv %s538
        %v549 = vadd.s32 %v548, %v540
        %v550 = vadd.s32 %v548, %v541
        %v551 = vadd.s32 %v548, %v542
        %v552 = vadd.s32 %v548, %v543
        %v553 = vadd.s32 %v548, %v544
        %v554 = vadd.s32 %v548, %v545
        %v555 = vadd.s32 %v548, %v546
        %v556 = vadd.s32 %v548, %v547
        %vm557 = vcmp.lt.s32.totalorder %v549, 300
        %vm558 = vcmp.lt.s32.totalorder %v550, 300
        %vm559 = vcmp.lt.s32.totalorder %v551, 300
        %vm560 = vcmp.lt.s32.totalorder %v552, 300
        %vm561 = vcmp.lt.s32.totalorder %v553, 300
        %vm562 = vcmp.lt.s32.totalorder %v554, 300
        %vm563 = vcmp.lt.s32.totalorder %v555, 300
        %vm564 = vcmp.lt.s32.totalorder %v556, 300
        %v565 = vsel %vm557, %v488, 0.0
        %v566 = vsel %vm558, %v495, 0.0
        %v567 = vsel %vm559, %v502, 0.0
        %v568 = vsel %vm560, %v509, 0.0
        %v569 = vsel %vm561, %v516, 0.0
        %v570 = vsel %vm562, %v523, 0.0
        %v571 = vsel %vm563, %v530, 0.0
        %v572 = vsel %vm564, %v537, 0.0
        %v573 = vsel %vm439, %v565, 0.0
        %v574 = vsel %vm439, %v566, 0.0
        %v575 = vadd.f32 %v573, %v574
        %v576 = vsel %vm439, %v567, 0.0
        %v577 = vadd.f32 %v575, %v576
        %v578 = vsel %vm439, %v568, 0.0
        %v579 = vadd.f32 %v577, %v578
        %v580 = vsel %vm439, %v569, 0.0
        %v581 = vadd.f32 %v579, %v580
        %v582 = vsel %vm439, %v570, 0.0
        %v583 = vadd.f32 %v581, %v582
        %v584 = vsel %vm439, %v571, 0.0
        %v585 = vadd.f32 %v583, %v584
        %v586 = vsel %vm439, %v572, 0.0
        %v587 = vadd.f32 %v585, %v586
        %588 = vadd.xlane.f32.xlu0 %v587
        %v589 = vpop.xlane.xlu0 %588
        %v590 = vrot.slane %v589, 4
        %v591 = vadd.f32 %v589, %v590
        %v592 = vrot.slane %v591, 2
        %v593 = vadd.f32 %v591, %v592
        %v594 = vrot.slane %v593, 1
        %v595 = vadd.f32 %v593, %v594
        %s596 = vtos %v595
        %v597 = vstv %s596
        %v598 = vld [vmem:[#allocation4] sm:$0x1]
        %v599 = vsel %vm466, 0.0, %v598
        %v600 = vadd.f32 %v599, %v597
        %vm601 = vcmask 0
        %602 = vst.msk [vmem:[#allocation4] sm:$0x1] %vm601, %v600
      $region32: #{tpu_custom_call.1} parent=27 // pred_fallthru
        _
      %p603 = scmp.eq.s32.totalorder %s19, 4
      // Predicated region
      $region33: #{tpu_custom_call.1} parent=27 // pred_check
        %p604 = pneg %p603
      $region34: #{tpu_custom_call.1} parent=27 // pred_check_branch
        %606 = sbr.rel (%p604) target = $region36
      $region35: #{tpu_custom_call.1} parent=27 // pred_region
        %v607 = vmax.f32 %v468, 0.0
        %v608 = vrsqrt.pop %v607
        %v609 = vmul.f32 %v607, %v608
        %vm610 = vcmp.eq.f32.partialorder %v607, inf
        %v611 = vsel %vm610, %v607, %v609
        %vm612 = vcmp.eq.f32.partialorder %v607, 0.0
        %v613 = vand.u32 %v607, 2147483648
        %v614 = vsel %vm612, %v613, %v611
        %s615 = smul.u32 %s20, 128
        %v616 = vlaneseq
        %v617 = vand.u32 %v616, 127
        %v618 = vstv %s615
        %v619 = vadd.s32 %v618, %v617
        %vm620 = vcmp.lt.s32.totalorder %v619, 260
        %v621 = vsel %vm620, %v614, 0.0
        %vm622 = vcmask 1040384
        %v623 = vsel %vm622, %v621, 0.0
        %624 = vadd.xlane.f32.xlu0 %v623
        %v625 = vpop.xlane.xlu0 %624
        %v626 = vrot.slane %v625, 4
        %v627 = vadd.f32 %v625, %v626
        %v628 = vrot.slane %v627, 2
        %v629 = vadd.f32 %v627, %v628
        %v630 = vrot.slane %v629, 1
        %v631 = vadd.f32 %v629, %v630
        %s632 = vtos %v631
        %v633 = vstv %s632
        %v634 = vld [vmem:[#allocation5] sm:$0x1]
        %v635 = vsel %vm422, 0.0, %v634
        %v636 = vadd.f32 %v635, %v633
        %vm637 = vcmask 0
        %638 = vst.msk [vmem:[#allocation5] sm:$0x1] %vm637, %v636
      $region36: #{tpu_custom_call.1} parent=27 // pred_fallthru
        _
      %p639 = pnand %p603, %p470
      %p640 = pneg %p639
      // Predicated region
      $region37: #{tpu_custom_call.1} parent=27 // pred_check
        _
      $region38: #{tpu_custom_call.1} parent=27 // pred_check_branch
        %642 = sbr.rel (%p639) target = $region40
      $region39: #{tpu_custom_call.1} parent=27 // pred_region
        %v643 = vld [vmem:[#allocation4] sm:$0x1]
        %v644 = vmul.f32 %v643, 0.0033333334
        %v645 = vld [vmem:[#allocation5] sm:$0x1]
        %v646 = vmul.f32 %v645, 0.0038461538
        %v647 = vadd.f32 %v644, %v646
        %v648 = vmul.f32 %v647, 0.5
        %vm649 = vcmask 0
        %650 = vst.msk [vmem:[%s205] sm:$0x1] %vm649, %v648
      $region40: #{tpu_custom_call.1} parent=27 // pred_fallthru
        _
      %p651 = scmp.lt.s32.totalorder %s18, 1
      %s652 = scalar_select %p651, %s18, 1
      %s653 = scalar_lea.vmem %s2, %s652
      // Predicated region
      $region41: #{tpu_custom_call.1} parent=27 // pred_check
        %p654 = pneg %p106
      $region42: #{tpu_custom_call.1} parent=27 // pred_check_branch
        %656 = sbr.rel (%p654) target = $region44
      $region43: #{tpu_custom_call.1} parent=27 // pred_region
        _
      $region44: #{tpu_custom_call.1} parent=27 // pred_fallthru
        _
    $region28: #{tpu_custom_call.1} parent=5 // pred_fallthru
      _
    %p657 = scmp.le.s32.totalorder 2, %s8
    // Predicated region
    $region45: #{tpu_custom_call.1} parent=5 // pred_check
      %p658 = pneg %p657
    $region46: #{tpu_custom_call.1} parent=5 // pred_check_branch
      %660 = sbr.rel (%p658) target = $region48
    $region47: #{tpu_custom_call.1} parent=5 // pred_region
      %s661 = ssub.s32 %s8, 2
      // Predicated region
      $region49: #{tpu_custom_call.1} parent=47 // pred_check
        %p662 = pneg %p112
      $region50: #{tpu_custom_call.1} parent=47 // pred_check_branch
        %664 = sbr.rel (%p662) target = $region52
      $region51: #{tpu_custom_call.1} parent=47 // pred_region
        %p665 = scmp.lt.s32.totalorder %s21, 1
        %s666 = scalar_select %p665, %s21, 1
        %s667 = scalar_lea.vmem %s2, %s666
      $region52: #{tpu_custom_call.1} parent=47 // pred_fallthru
        _
    $region48: #{tpu_custom_call.1} parent=5 // pred_fallthru
      _
  $region6: #{tpu_custom_call.1} parent=0 // loop_footer
    %s12 = sadd.s32 1, %s8
  $region7: #{tpu_custom_call.1} parent=0 // loop_footer_branch
    %7 = sbr.rel target = $region3
  $region8: #{tpu_custom_call.1} parent=0 // loop_exit
    _

</llo_original>
